<compile_context>
chip_gen: v5e
topology: v5e:2x2
jax: 0.10.0
libtpu: 0.0.40
codegen_flags: <defaults>
</compile_context>

<pallas_src>
import jax
import jax.numpy as jnp
from jax.experimental import pallas as pl
from jax.experimental.pallas import tpu as pltpu


# ------------------------------ Pallas kernel ------------------------------

def _cac_kernel(x_ref, w_ref, shift_ref, out_ref):
    # x_ref     : (2, 1, C, THW)  both concat halves for this (batch, hw-tile)
    # w_ref     : (C, 2C)         BN-scale-folded 1x1 conv weight (resident)
    # shift_ref : (C, 1)          BN shift = beta - mean * gamma / sqrt(var+eps)
    # out_ref   : (1, C, THW)
    _, _, C, THW = x_ref.shape
    xk = x_ref[...].reshape(2 * C, THW)          # contiguous block -> free reshape
    acc = jnp.dot(w_ref[...], xk, preferred_element_type=jnp.float32)
    out_ref[0] = (acc + shift_ref[...]).astype(out_ref.dtype)


# --------------------------------- wrapper ---------------------------------

def cac_pallas(x, w, gamma, beta, running_mean, running_var, eps=1e-5):
    """x: (2, B, C, H, W) stacked [x_ccd, x_dem]; w: (C, 2C, 1, 1) conv weight
    (no bias); gamma/beta/running_mean/running_var: (C,) BatchNorm params."""
    two, B, C, H, W = x.shape
    assert two == 2
    HW = H * W

    # ---- Fold BatchNorm (inference mode) into the conv weight / shift. ----
    # TODO(synk): training-mode batch statistics are not computed here.
    inv_std = jax.lax.rsqrt(running_var.astype(jnp.float32) + eps)
    scale = gamma.astype(jnp.float32) * inv_std                       # (C,)
    w_folded = scale[:, None] * w.reshape(C, 2 * C).astype(jnp.float32)  # (C, 2C)
    shift = (beta.astype(jnp.float32)
             - running_mean.astype(jnp.float32) * scale).reshape(C, 1)

    # ---- Layout plumbing: lane-dense spatial axis, tiled + padded. ----
    hw128 = -(-HW // 128) * 128                  # round up to full vreg lanes
    # keep double-buffered f32 (2C-in + C-out rows per lane) per step well under
    # the tightest scoped-VMEM defaults (v5e 16 MiB, v7x 32 MiB)
    budget_lanes = (8 << 20) // ((2 * C + C) * 4)
    thw = min(hw128, 2048, max(128, (budget_lanes // 128) * 128))
    hw_pad = -(-HW // thw) * thw
    n_hw = hw_pad // thw

    xf = x.reshape(2, B, C, HW).astype(jnp.float32)   # metadata-only reshape
    if hw_pad != HW:
        xf = jnp.pad(xf, ((0, 0), (0, 0), (0, 0), (0, hw_pad - HW)))

    out = pl.pallas_call(
        _cac_kernel,
        out_shape=jax.ShapeDtypeStruct((B, C, hw_pad), jnp.float32),
        grid=(B, n_hw),
        in_specs=[
            pl.BlockSpec((2, 1, C, thw), lambda b, s: (0, b, 0, s)),  # both halves
            pl.BlockSpec((C, 2 * C), lambda b, s: (0, 0)),            # folded W
            pl.BlockSpec((C, 1), lambda b, s: (0, 0)),                # BN shift
        ],
        out_specs=pl.BlockSpec((1, C, thw), lambda b, s: (b, 0, s)),
        compiler_params=pltpu.CompilerParams(
            dimension_semantics=("parallel", "parallel")),            # v7x megacore
    )(xf, w_folded, shift)

    if hw_pad != HW:
        out = out[:, :, :HW]
    return out.reshape(B, C, H, W)


# ---------------------- pure-JAX reference (for checking) -------------------

def _cac_reference(t1, t2, w, gamma, beta, running_mean, running_var, eps=1e-5):
    xcat = jnp.concatenate([t1, t2], axis=1)                 # (B, 2C, H, W)
    y = jax.lax.conv_general_dilated(
        xcat, w, window_strides=(1, 1), padding="VALID",
        dimension_numbers=("NCHW", "OIHW", "NCHW"),
        precision=jax.lax.Precision.HIGHEST)
    inv_std = 1.0 / jnp.sqrt(running_var + eps)
    scale = (gamma * inv_std)[None, :, None, None]
    shift = (beta - running_mean * gamma * inv_std)[None, :, None, None]
    return y * scale + shift


if __name__ == "__main__":
    B, C, H, W = 2, 16, 16, 16

    key = jax.random.PRNGKey(0)
    kx, kw, kg, kb, km, kv = jax.random.split(key, 6)
    x = jax.random.normal(kx, (2, B, C, H, W), jnp.float32)          # [x_ccd, x_dem]
    w = 0.1 * jax.random.normal(kw, (C, 2 * C, 1, 1), jnp.float32)   # Conv2d(2C, C, 1, bias=False)
    gamma = 1.0 + 0.1 * jax.random.normal(kg, (C,), jnp.float32)
    beta = 0.1 * jax.random.normal(kb, (C,), jnp.float32)
    running_mean = 0.1 * jax.random.normal(km, (C,), jnp.float32)
    running_var = jnp.abs(jax.random.normal(kv, (C,), jnp.float32)) + 0.5

    out = jax.block_until_ready(
        cac_pallas(x, w, gamma, beta, running_mean, running_var))

    ref = _cac_reference(x[0], x[1], w, gamma, beta, running_mean, running_var)
    assert out.shape == (B, C, H, W)
    max_err = float(jnp.max(jnp.abs(out - ref)))
    assert jnp.allclose(out, ref, atol=2e-3, rtol=2e-3), max_err
    print("KERNEL_OK")
</pallas_src>

<mosaic_0001>
module attributes {stable_mosaic.version = 11 : i64} {
  func.func @_cac_kernel(%arg0: i32, %arg1: i32, %arg2: memref<2x1x16x256xf32, #tpu.memory_space<vmem>>, %arg3: memref<16x32xf32, #tpu.memory_space<vmem>>, %arg4: memref<16x1xf32, #tpu.memory_space<vmem>>, %arg5: memref<1x16x256xf32, #tpu.memory_space<vmem>>) attributes {dimension_semantics = [#tpu.dimension_semantics<parallel>, #tpu.dimension_semantics<parallel>], iteration_bounds = array<i64: 2, 1>, scalar_prefetch = 0 : i64, scratch_operands = 0 : i64, tpu.core_type = #tpu.core_type<tc>, window_params = [{transform_indices = @transform_0, window_bounds = array<i64: 2, 1, 16, 256>}, {pipeline_mode = #tpu.pipeline_mode<synchronous>, transform_indices = @transform_1, window_bounds = array<i64: 16, 32>}, {pipeline_mode = #tpu.pipeline_mode<synchronous>, transform_indices = @transform_2, window_bounds = array<i64: 16, 1>}, {transform_indices = @transform_3, window_bounds = array<i64: 1, 16, 256>}]} {
    %c0 = arith.constant 0 : index
    %c0_0 = arith.constant 0 : index
    %c0_1 = arith.constant 0 : index
    %c0_2 = arith.constant 0 : index
    %0 = vector.load %arg2[%c0, %c0_0, %c0_1, %c0_2] : memref<2x1x16x256xf32, #tpu.memory_space<vmem>>, vector<2x1x16x256xf32>
    %1 = vector.shape_cast %0 : vector<2x1x16x256xf32> to vector<32x256xf32>
    %c0_3 = arith.constant 0 : index
    %c0_4 = arith.constant 0 : index
    %2 = vector.load %arg3[%c0_3, %c0_4] : memref<16x32xf32, #tpu.memory_space<vmem>>, vector<16x32xf32>
    %cst = arith.constant dense<0.000000e+00> : vector<16x256xf32>
    %3 = tpu.matmul %2, %1, %cst {dimension_numbers = #tpu.dot_dimension_numbers<[1], [0], [0], [1], [0, 0, 1, 1], [], []>} : vector<16x32xf32>, vector<32x256xf32>, vector<16x256xf32> -> vector<16x256xf32>
    %c0_5 = arith.constant 0 : index
    %c0_6 = arith.constant 0 : index
    %4 = vector.load %arg4[%c0_5, %c0_6] : memref<16x1xf32, #tpu.memory_space<vmem>>, vector<16x1xf32>
    %5 = vector.broadcast %4 : vector<16x1xf32> to vector<16x256xf32>
    %6 = arith.addf %3, %5 : vector<16x256xf32>
    %c0_7 = arith.constant 0 : index
    %c0_8 = arith.constant 0 : index
    %c0_9 = arith.constant 0 : index
    %7 = vector.load %arg5[%c0_7, %c0_8, %c0_9] : memref<1x16x256xf32, #tpu.memory_space<vmem>>, vector<1x16x256xf32>
    %8 = vector.shape_cast %7 : vector<1x16x256xf32> to vector<16x256xf32>
    %9 = vector.shape_cast %6 : vector<16x256xf32> to vector<1x16x256xf32>
    tpu.vector_store %arg5[%c0_7, %c0_8, %c0_9], %9 {strides = array<i32>} : memref<1x16x256xf32, #tpu.memory_space<vmem>>, vector<1x16x256xf32>,
    return
  }
  func.func @transform_0(%arg0: i32, %arg1: i32) -> (i32, i32, i32, i32) {
    %c0_i32 = arith.constant 0 : i32
    %c0_i32_0 = arith.constant 0 : i32
    %c0_i32_1 = arith.constant 0 : i32
    return %c0_i32, %arg0, %c0_i32_0, %arg1 : i32, i32, i32, i32
  }
  func.func @transform_1(%arg0: i32, %arg1: i32) -> (i32, i32) {
    %c0_i32 = arith.constant 0 : i32
    %c0_i32_0 = arith.constant 0 : i32
    %c0_i32_1 = arith.constant 0 : i32
    return %c0_i32, %c0_i32_0 : i32, i32
  }
  func.func @transform_2(%arg0: i32, %arg1: i32) -> (i32, i32) {
    %c0_i32 = arith.constant 0 : i32
    %c0_i32_0 = arith.constant 0 : i32
    %c0_i32_1 = arith.constant 0 : i32
    return %c0_i32, %c0_i32_0 : i32, i32
  }
  func.func @transform_3(%arg0: i32, %arg1: i32) -> (i32, i32, i32) {
    %c0_i32 = arith.constant 0 : i32
    %c0_i32_0 = arith.constant 0 : i32
    return %arg0, %c0_i32, %arg1 : i32, i32, i32
  }
}

</mosaic_0001>

<llo_original>
// kernel: tpu_custom_call.1
$region0: #{tpu_custom_call.1}
  #allocation0 [shape = 'u32[]', space=smem, size = 0x4, offset = 0x4, fixed_abs, tag = 'smem constant byte address 0x4 - core index']
  #allocation1 [shape = 'u32[72,128]{1,0:T(1,128)}', space=vmem, size = 0x9000, scoped, tag = 'internal scratch']
  #allocation6 [shape = 's32[]', space=sflag, size = 0x4, offset = 0, fixed_abs, tag = 'sflag constant byte address 0x0 - dummy sync flag']
  %s0 = inlined_call_operand.hbm [shape: f32[2,2,16,256], index: 0, kind: input, shape index: {}]
  %s1 = inlined_call_operand.vmem [shape: f32[16,32], index: 1, kind: input, shape index: {}]
  %s2 = inlined_call_operand.vmem [shape: f32[16,1], index: 2, kind: input, shape index: {}]
  %s3 = inlined_call_operand.hbm [shape: f32[2,16,256], index: 3, kind: output, shape index: {}]
  %s4 = sld [smem:[#allocation0]]
  $region49: #{tpu_custom_call.1} parent=0
    _
  %s6 = ssub.s32 1, %s4
  %s7 = scalar_select 0, %s6, %s4
  $region1: #{tpu_custom_call.1} parent=0
    #allocation2 [shape = 'u8[65536]{0}', space=vmem, size = 0x10000, scoped, tag = 'input window, operand 0']
    #allocation3 [shape = 's32[2]{0}', space=sflag, size = 0x8, scoped, tag = 'scoped memory for tpu_custom_call.1']
    #allocation4 [shape = 's32[2]{0}', space=sflag, size = 0x8, scoped, tag = 'scoped memory for tpu_custom_call.1']
    #allocation5 [shape = 'u8[32768]{0}', space=vmem, size = 0x8000, scoped, tag = 'output window, operand 0']
    %8 = vsyncpa [#allocation3], 0
    %s9 = scalar_lea.sflag [#allocation3], 1
    %10 = vsyncpa %s9, 0
    %11 = vsyncpa [#allocation4], 0
    %s12 = scalar_lea.sflag [#allocation4], 1
    %13 = vsyncpa %s12, 0
    loop: start=0, step=1, limit=4
    $region2: #{tpu_custom_call.1} parent=1 // loop_pre_header
      _
    $region3: #{tpu_custom_call.1} parent=1 // loop_header
      %s15 = sphi 0, %s19
      %p16 = scmp.ge.s32.totalorder %s15, 4
      %s22 = sphi 0, %s34
      %s23 = sphi 0, %s30
      %s24 = sphi 0, %s22
      %s25 = sphi 0, %s23
      %s26 = sphi 0, %s24
      %s27 = sphi 0, %s25
      %s39 = sphi 0, %s41
      %s42 = sphi 0, %s39
      %s43 = sphi 0, %s42
      %s59 = sphi 0, %s43
      %s63 = sphi 0, %s63
      %s65 = sphi 0, %s63
      %s66 = sphi 0, %s65
      %s80 = sphi 0, %s66
      %s84 = sphi 0, %s84
      %s86 = sphi 0, %s84
      %s87 = sphi 0, %s86
      %s101 = sphi 0, %s87
      %s109 = sphi 0, %s111
      %s112 = sphi 0, %s109
      %s113 = sphi 0, %s112
      %s129 = sphi 0, %s113
    $region4: #{tpu_custom_call.1} parent=1 // loop_header_branch
      %18 = sbr.rel (%p16) target = $region8
    $region5: #{tpu_custom_call.1} parent=1 // loop_body
      %s20 = ssub.s32 %s15, 1
      %s21 = ssub.s32 %s15, 2
      %s28 = sadd.s32 1, %s23
      %p29 = scmp.ge.s32.totalorder %s28, 1
      %s30 = scalar_select %p29, 0, %s28
      %s31 = sadd.s32 1, %s22
      %s32 = scalar_select %p29, %s31, %s22
      %p33 = scmp.ge.s32.totalorder %s32, 2
      %s34 = scalar_select %p33, 0, %s32
      %s35 = ssub.s32 %s22, %s34
      %s36 = ssub.s32 %s23, %s30
      %s37 = sor.u32 %s35, %s36
      %p38 = scmp.eq.s32.totalorder %s37, 0
      %s40 = sadd.s32 %s39, 1
      %s41 = scalar_select %p38, %s39, %s40
      %p44 = pneg %p38
      %p45 = scmp.eq.s32.totalorder %s15, 1
      %p46 = por %p44, %p45
      %p47 = scmp.ne.s32.totalorder %s39, %s42
      %p48 = scmp.eq.s32.totalorder %s15, 0
      %p49 = por %p47, %p48
      %p50 = scmp.ne.s32.totalorder %s39, %s42
      %p51 = scmp.eq.s32.totalorder %s20, 1
      %p52 = por %p50, %p51
      %p53 = scmp.ne.s32.totalorder %s42, %s43
      %p54 = scmp.eq.s32.totalorder %s20, 0
      %p55 = por %p53, %p54
      %p56 = scmp.ne.s32.totalorder %s42, %s43
      %p57 = scmp.eq.s32.totalorder %s21, 1
      %p58 = por %p56, %p57
      %p60 = scmp.ne.s32.totalorder %s43, %s59
      %p61 = scmp.eq.s32.totalorder %s21, 0
      %p62 = por %p60, %p61
      %s64 = sadd.s32 %s63, 1
      %p67 = scmp.eq.s32.totalorder %s15, 1
      %p68 = scmp.ne.s32.totalorder %s63, %s65
      %p69 = scmp.eq.s32.totalorder %s15, 0
      %p70 = por %p68, %p69
      %p71 = scmp.ne.s32.totalorder %s63, %s65
      %p72 = scmp.eq.s32.totalorder %s20, 1
      %p73 = por %p71, %p72
      %p74 = scmp.ne.s32.totalorder %s65, %s66
      %p75 = scmp.eq.s32.totalorder %s20, 0
      %p76 = por %p74, %p75
      %p77 = scmp.ne.s32.totalorder %s65, %s66
      %p78 = scmp.eq.s32.totalorder %s21, 1
      %p79 = por %p77, %p78
      %p81 = scmp.ne.s32.totalorder %s66, %s80
      %p82 = scmp.eq.s32.totalorder %s21, 0
      %p83 = por %p81, %p82
      %s85 = sadd.s32 %s84, 1
      %p88 = scmp.eq.s32.totalorder %s15, 1
      %p89 = scmp.ne.s32.totalorder %s84, %s86
      %p90 = scmp.eq.s32.totalorder %s15, 0
      %p91 = por %p89, %p90
      %p92 = scmp.ne.s32.totalorder %s84, %s86
      %p93 = scmp.eq.s32.totalorder %s20, 1
      %p94 = por %p92, %p93
      %p95 = scmp.ne.s32.totalorder %s86, %s87
      %p96 = scmp.eq.s32.totalorder %s20, 0
      %p97 = por %p95, %p96
      %p98 = scmp.ne.s32.totalorder %s86, %s87
      %p99 = scmp.eq.s32.totalorder %s21, 1
      %p100 = por %p98, %p99
      %p102 = scmp.ne.s32.totalorder %s87, %s101
      %p103 = scmp.eq.s32.totalorder %s21, 0
      %p104 = por %p102, %p103
      %s105 = ssub.s32 %s22, %s34
      %s106 = ssub.s32 %s23, %s30
      %s107 = sor.u32 %s105, %s106
      %p108 = scmp.eq.s32.totalorder %s107, 0
      %s110 = sadd.s32 %s109, 1
      %s111 = scalar_select %p108, %s109, %s110
      %p114 = pneg %p108
      %p115 = scmp.eq.s32.totalorder %s15, 1
      %p116 = por %p114, %p115
      %p117 = scmp.ne.s32.totalorder %s109, %s112
      %p118 = scmp.eq.s32.totalorder %s15, 0
      %p119 = por %p117, %p118
      %p120 = scmp.ne.s32.totalorder %s109, %s112
      %p121 = scmp.eq.s32.totalorder %s20, 1
      %p122 = por %p120, %p121
      %p123 = scmp.ne.s32.totalorder %s112, %s113
      %p124 = scmp.eq.s32.totalorder %s20, 0
      %p125 = por %p123, %p124
      %p126 = scmp.ne.s32.totalorder %s112, %s113
      %p127 = scmp.eq.s32.totalorder %s21, 1
      %p128 = por %p126, %p127
      %p130 = scmp.ne.s32.totalorder %s113, %s129
      %p131 = scmp.eq.s32.totalorder %s21, 0
      %p132 = por %p130, %p131
      %p133 = scmp.le.s32.totalorder 1, %s15
      %p134 = scmp.lt.s32.totalorder %s15, 3
      %p135 = pnand %p133, %p134
      %p136 = pneg %p135
      // Predicated region
      $region9: #{tpu_custom_call.1} parent=5 // pred_check
        _
      $region10: #{tpu_custom_call.1} parent=5 // pred_check_branch
        %138 = sbr.rel (%p135) target = $region12
      $region11: #{tpu_custom_call.1} parent=5 // pred_region
        %s139 = ssub.s32 %s15, 1
        // Predicated region
        $region13: #{tpu_custom_call.1} parent=11 // pred_check
          %p140 = pneg %p76
        $region14: #{tpu_custom_call.1} parent=11 // pred_check_branch
          %142 = sbr.rel (%p140) target = $region16
        $region15: #{tpu_custom_call.1} parent=11 // pred_region
          _
        $region16: #{tpu_custom_call.1} parent=11 // pred_fallthru
          _
        // Predicated region
        $region17: #{tpu_custom_call.1} parent=11 // pred_check
          %p143 = pneg %p97
        $region18: #{tpu_custom_call.1} parent=11 // pred_check_branch
          %145 = sbr.rel (%p143) target = $region20
        $region19: #{tpu_custom_call.1} parent=11 // pred_region
          _
        $region20: #{tpu_custom_call.1} parent=11 // pred_fallthru
          _
      $region12: #{tpu_custom_call.1} parent=5 // pred_fallthru
        _
      %p146 = scmp.lt.s32.totalorder %s15, 2
      // Predicated region
      $region21: #{tpu_custom_call.1} parent=5 // pred_check
        %p147 = pneg %p146
      $region22: #{tpu_custom_call.1} parent=5 // pred_check_branch
        %149 = sbr.rel (%p147) target = $region24
      $region23: #{tpu_custom_call.1} parent=5 // pred_region
        // Predicated region
        $region25: #{tpu_custom_call.1} parent=23 // pred_check
          %p150 = pneg %p49
        $region26: #{tpu_custom_call.1} parent=23 // pred_check_branch
          %152 = sbr.rel (%p150) target = $region28
        $region27: #{tpu_custom_call.1} parent=23 // pred_region
          #allocation7 [shape = 'u32[6]{0}', space=smem, size = 0x18, scoped, tag = 'DMA stride descriptor']
          %s153 = sand.u32 %s39, 1
          %s154 = scalar_lea.sflag [#allocation3], %s153
          %s155 = sand.u32 %s39, 1
          %s156 = smul.addr %s155, 64
          %s157 = scalar_lea.vmem [#allocation2], %s156
          %s158 = smul.u32 2, %s23
          %160 = vsyncadd %s154, 0
          %s161 = smul.addr %s22, 4
          %s162 = sadd.s32 %s158, %s161
          %s163 = smul.addr %s162, 8
          %s164 = scalar_lea.hbm %s0, %s163
          %s166 = sshll.u32 1, 14
          %s167 = sxor.u32 4294967295, %s166
          %s169 = sld [smem:[#allocation0]]
          %s170 = sadd.s32 2, %s169
          %s172 = sshll.u32 7, 26
          %s173 = sxor.u32 4294967295, %s172
          %s174 = sand.u32 0, %s173
          %s175 = sshll.u32 %s170, 26
          %s176 = sor.u32 %s174, %s175
          %s177 = sshll.u32 %s164, 4
          %s178 = int_to_ptr.hbm [resolvable:$true] %s177
          %s179 = sshll.u32 %s157, 4
          %s180 = int_to_ptr.vmem [resolvable:$true] %s179
          %186 = sst [smem:[#allocation7]] 1024
          %s187 = scalar_lea.smem [#allocation7], 1
          %188 = sst [smem:[%s187]] 512
          %s189 = scalar_lea.smem [#allocation7], 2
          %190 = sst [smem:[%s189]] 2
          %s191 = scalar_lea.smem [#allocation7], 3
          %192 = sst [smem:[%s191]] 256
          %s193 = scalar_lea.smem [#allocation7], 4
          %194 = sst [smem:[%s193]] 256
          %s195 = scalar_lea.smem [#allocation7], 5
          %196 = sst [smem:[%s195]] 16
          %198 = dma.general %s178, 1024, %s180, %s154, [#allocation6], [#allocation7], %s176, 0
        $region28: #{tpu_custom_call.1} parent=23 // pred_fallthru
          _
      $region24: #{tpu_custom_call.1} parent=5 // pred_fallthru
        _
      %p199 = scmp.le.s32.totalorder 1, %s15
      %p200 = scmp.lt.s32.totalorder %s15, 3
      %p201 = pnand %p199, %p200
      %p202 = pneg %p201
      // Predicated region
      $region29: #{tpu_custom_call.1} parent=5 // pred_check
        _
      $region30: #{tpu_custom_call.1} parent=5 // pred_check_branch
        %204 = sbr.rel (%p201) target = $region32
      $region31: #{tpu_custom_call.1} parent=5 // pred_region
        %s205 = ssub.s32 %s15, 1
        %s206 = sand.u32 %s42, 1
        %s207 = scalar_lea.sflag [#allocation3], %s206
        %s208 = sand.u32 %s42, 1
        %s209 = smul.addr %s208, 64
        %s210 = scalar_lea.vmem [#allocation2], %s209
        // Predicated region
        $region33: #{tpu_custom_call.1} parent=31 // pred_check
          %p211 = pneg %p55
        $region34: #{tpu_custom_call.1} parent=31 // pred_check_branch
          %213 = sbr.rel (%p211) target = $region36
        $region35: #{tpu_custom_call.1} parent=31 // pred_region
          %215 = dma.done %s207, 1024
        $region36: #{tpu_custom_call.1} parent=31 // pred_fallthru
          _
        %s216 = sand.u32 %s42, 1
        %s217 = scalar_lea.sflag [#allocation3], %s216
        %s218 = sand.u32 %s42, 1
        %s219 = smul.addr %s218, 64
        %s220 = scalar_lea.vmem [#allocation2], %s219
        %p221 = pneg %p55
        %p222 = pneg %p52
        %p223 = pneg %p76
        %p224 = pneg %p73
        %p225 = pneg %p97
        %p226 = pneg %p94
        %p227 = pneg %p125
        %p228 = pneg %p122
        %s229 = sand.u32 %s112, 1
        %s230 = scalar_lea.sflag [#allocation4], %s229
        %s231 = sand.u32 %s112, 1
        %s232 = smul.addr %s231, 32
        %s233 = scalar_lea.vmem [#allocation5], %s232
        %s234 = smul.u32 2, %s25
        %s235 = smul.u32 2, %s25
        %v236 = vld [vmem:[%s210] sm:$0xff]
        %v237 = vld [vmem:[%s210 + $0x8] sm:$0xff]
        %v238 = vld [vmem:[%s210 + $0x10] sm:$0xff]
        %v239 = vld [vmem:[%s210 + $0x18] sm:$0xff]
        %v240 = vld [vmem:[%s210 + $0x20] sm:$0xff]
        %v241 = vld [vmem:[%s210 + $0x28] sm:$0xff]
        %v242 = vld [vmem:[%s210 + $0x30] sm:$0xff]
        %v243 = vld [vmem:[%s210 + $0x38] sm:$0xff]
        %v244 = vld [vmem:[%s1] sm:$0xff]
        %v245 = vld [vmem:[%s1 + $0x8] sm:$0xff]
        %v246 = vld [vmem:[%s2] sm:$0xff]
        %v247 = vld [vmem:[%s2 + $0x8] sm:$0xff]
        %249 = vset.pattern.permute.xlu0 0
        %250 = vperm.xlu0 %249, %v246
        %v251 = vpop.permute.xlu0 %250
        %254 = vset.pattern.permute.xlu0 0
        %255 = vperm.xlu0 %254, %v247
        %v256 = vpop.permute.xlu0 %255
        %vm258 = vcmask 261120
        %v260 = vsel %vm258, %v244, 0
        %v263 = vsel %vm258, %v245, 0
        %265 = vmatpush.msra.mxu0 0.0
        %266 = vmatpush.msra.mxu0 0.0
        %267 = vmatpush.msra.mxu0 0.0
        %268 = vmatpush.msra.mxu0 0.0
        %269 = vmatpush.msra.mxu0 0.0
        %270 = vmatpush.msra.mxu0 0.0
        %271 = vmatpush.msra.mxu0 0.0
        %272 = vmatpush.msra.mxu0 0.0
        %273 = vmatpush.msra.mxu0 0.0
        %274 = vmatpush.msra.mxu0 0.0
        %275 = vmatpush.msra.mxu0 0.0
        %276 = vmatpush.msra.mxu0 0.0
        %277 = vmatpush.msra.mxu0 %v242
        %278 = vmatpush.msra.mxu0 %v240
        %279 = vmatpush.msra.mxu0 %v238
        %280 = vmatpush.msra.mxu0 %v236
        %281 = vmatmul.f32.gmra.mxu0 %v260
        %v282 = vpop.f32.mrf.mxu0
        %v283 = vadd.f32 %v251, %v282
        %284 = vmatmul.f32.gmra.mxu0 %v263
        %v285 = vpop.f32.mrf.mxu0
        %v286 = vadd.f32 %v256, %v285
        %287 = vdwg.mxu0
        %288 = vmatpush.msra.mxu0 0.0
        %289 = vmatpush.msra.mxu0 0.0
        %290 = vmatpush.msra.mxu0 0.0
        %291 = vmatpush.msra.mxu0 0.0
        %292 = vmatpush.msra.mxu0 0.0
        %293 = vmatpush.msra.mxu0 0.0
        %294 = vmatpush.msra.mxu0 0.0
        %295 = vmatpush.msra.mxu0 0.0
        %296 = vmatpush.msra.mxu0 0.0
        %297 = vmatpush.msra.mxu0 0.0
        %298 = vmatpush.msra.mxu0 0.0
        %299 = vmatpush.msra.mxu0 0.0
        %300 = vmatpush.msra.mxu0 %v243
        %301 = vmatpush.msra.mxu0 %v241
        %302 = vmatpush.msra.mxu0 %v239
        %303 = vmatpush.msra.mxu0 %v237
        %304 = vmatmul.f32.gmra.mxu0 %v260
        %v305 = vpop.f32.mrf.mxu0
        %v306 = vadd.f32 %v251, %v305
        %307 = vmatmul.f32.gmra.mxu0 %v263
        %v308 = vpop.f32.mrf.mxu0
        %v309 = vadd.f32 %v256, %v308
        %310 = vdwg.mxu0
        %311 = vst [vmem:[%s233] sm:$0xff] %v283
        %312 = vst [vmem:[%s233 + $0x8] sm:$0xff] %v306
        %313 = vst [vmem:[%s233 + $0x10] sm:$0xff] %v286
        %314 = vst [vmem:[%s233 + $0x18] sm:$0xff] %v309
        %s315 = sand.u32 %s112, 1
        %s316 = scalar_lea.sflag [#allocation4], %s315
        %s317 = sand.u32 %s112, 1
        %s318 = smul.addr %s317, 32
        %s319 = scalar_lea.vmem [#allocation5], %s318
        // Predicated region
        $region37: #{tpu_custom_call.1} parent=31 // pred_check
          %p320 = pneg %p122
        $region38: #{tpu_custom_call.1} parent=31 // pred_check_branch
          %322 = sbr.rel (%p320) target = $region40
        $region39: #{tpu_custom_call.1} parent=31 // pred_region
          %s323 = smul.u32 2, %s25
          %325 = vsyncadd %s316, 0
          %s326 = smul.addr %s24, 4
          %s327 = sadd.s32 %s323, %s326
          %s328 = smul.addr %s327, 8
          %s329 = scalar_lea.hbm %s3, %s328
          %s330 = sshll.u32 %s319, 4
          %s331 = int_to_ptr.vmem [resolvable:$true] %s330
          %s332 = sshll.u32 %s329, 4
          %s333 = int_to_ptr.hbm [resolvable:$true] %s332
          %338 = dma.vmem_to_hbm [thread:$0]  %s331, 512, %s333, %s316, 256, 256, 16
        $region40: #{tpu_custom_call.1} parent=31 // pred_fallthru
          _
      $region32: #{tpu_custom_call.1} parent=5 // pred_fallthru
        _
      %p339 = scmp.le.s32.totalorder 2, %s15
      // Predicated region
      $region41: #{tpu_custom_call.1} parent=5 // pred_check
        %p340 = pneg %p339
      $region42: #{tpu_custom_call.1} parent=5 // pred_check_branch
        %342 = sbr.rel (%p340) target = $region44
      $region43: #{tpu_custom_call.1} parent=5 // pred_region
        %s343 = ssub.s32 %s15, 2
        // Predicated region
        $region45: #{tpu_custom_call.1} parent=43 // pred_check
          %p344 = pneg %p128
        $region46: #{tpu_custom_call.1} parent=43 // pred_check_branch
          %346 = sbr.rel (%p344) target = $region48
        $region47: #{tpu_custom_call.1} parent=43 // pred_region
          %s347 = sand.u32 %s113, 1
          %s348 = scalar_lea.sflag [#allocation4], %s347
          %s349 = sand.u32 %s113, 1
          %s350 = smul.addr %s349, 32
          %s351 = scalar_lea.vmem [#allocation5], %s350
          %353 = dma.done %s348, 512
        $region48: #{tpu_custom_call.1} parent=43 // pred_fallthru
          _
      $region44: #{tpu_custom_call.1} parent=5 // pred_fallthru
        _
    $region6: #{tpu_custom_call.1} parent=1 // loop_footer
      %s19 = sadd.s32 1, %s15
    $region7: #{tpu_custom_call.1} parent=1 // loop_footer_branch
      %14 = sbr.rel target = $region3
    $region8: #{tpu_custom_call.1} parent=1 // loop_exit
      _
    %354 = vsyncpa [#allocation3], 1
    %s355 = scalar_lea.sflag [#allocation3], 1
    %356 = vsyncpa %s355, 1
    %357 = vsyncpa [#allocation4], 1
    %s358 = scalar_lea.sflag [#allocation4], 1
    %359 = vsyncpa %s358, 1

</llo_original>
